<compile_context>
chip_gen: v7x
topology: tpu7x:2x2x1
jax: 0.10.0
libtpu: 0.0.40
codegen_flags: <defaults>
</compile_context>

<pallas_src>
import math

import jax
import jax.numpy as jnp
from jax.experimental import pallas as pl
from jax.experimental.pallas import tpu as pltpu


# ----------------------------- kernels --------------------------------------


def _bmm_kernel(x1_ref, x2_ref, o_ref):
    # Single K block: contract and store directly (no scratch, no extra copy).
    # x1_ref: (bb, tm, tk), x2_ref: (bb, tk, tn), o_ref: (bb, tm, tn)
    o_ref[...] = jnp.einsum(
        "bmk,bkn->bmn", x1_ref[...], x2_ref[...],
        preferred_element_type=jnp.float32,
    ).astype(o_ref.dtype)


def _bmm_acc_out_kernel(x1_ref, x2_ref, o_ref):
    # K-tiled, f32 output: the output block index is constant across the K
    # axis, so the block stays resident in VMEM -- accumulate into it directly
    # (saves the f32 scratch buffer and the last-step copy).
    @pl.when(pl.program_id(3) == 0)
    def _():
        o_ref[...] = jnp.zeros_like(o_ref)

    o_ref[...] += jnp.einsum(
        "bmk,bkn->bmn", x1_ref[...], x2_ref[...],
        preferred_element_type=jnp.float32,
    )


def _bmm_acc_scratch_kernel(x1_ref, x2_ref, o_ref, acc_ref):
    # K-tiled, narrow output dtype (e.g. bf16): accumulate in f32 VMEM scratch
    # and cast+store once on the last K step.
    @pl.when(pl.program_id(3) == 0)
    def _():
        acc_ref[...] = jnp.zeros_like(acc_ref)

    acc_ref[...] += jnp.einsum(
        "bmk,bkn->bmn", x1_ref[...], x2_ref[...],
        preferred_element_type=jnp.float32,
    )

    @pl.when(pl.program_id(3) == pl.num_programs(3) - 1)
    def _():
        o_ref[...] = acc_ref[...].astype(o_ref.dtype)


# --------------------------- tiling heuristics -------------------------------

_MAX_BB = 128                        # bound the batched-einsum unroll
_MIN_PARALLEL_POINTS = 2             # v7x has 2 TensorCores
_LANE_PAD_MAX_OUT_BYTES = 4 << 20    # only lane-pad small (overhead-bound) outputs


def _round_up(x, m):
    return ((x + m - 1) // m) * m


def _generation_params():
    """VMEM-capacity-aware tiling budget.

    v5e/v6e (128 MiB VMEM): big tiles, 96 MiB scoped limit.
    v7x (64 MiB per TensorCore) and unknown hardware: conservative budget.
    """
    cap = 64 * 1024 * 1024
    try:
        info = pltpu.get_tpu_info()
        cap = int(getattr(info, "vmem_capacity_bytes", cap) or cap)
    except Exception:  # query unavailable -> stay conservative (v7x-safe)
        pass
    if cap >= 100 * 1024 * 1024:      # v5e / v6e
        return dict(tile_budget=56 << 20, vmem_cap=96 << 20,
                    max_tm=512, max_tn=512, max_tk=1024)
    return dict(tile_budget=24 << 20, vmem_cap=48 << 20,   # v7x / fallback
                max_tm=256, max_tn=256, max_tk=512)


def _pick_tk(K, max_tk):
    if K <= max_tk:
        return K
    # Prefer a 128-multiple divisor of K: avoids a zero-pad pass over HBM.
    d = max_tk - (max_tk % 128)
    while d >= 128:
        if K % d == 0:
            return d
        d -= 128
    return max_tk                      # non-divisible K -> zero-pad below


def _fold_broadcast_batches(x1, x2):
    """torch.matmul batch broadcasting without materializing copies.

    Trailing batch axes over which x2 is broadcast (size 1) are folded into
    x1's M dimension (a free reshape): no HBM-duplicated copy of the shared
    operand and >= fold*M LHS rows per MXU pass.
    """
    *b1, M, K = x1.shape
    *b2, K2, N = x2.shape
    if K != K2:
        raise ValueError(f"contraction dims must match: {K} vs {K2}")
    batch = jnp.broadcast_shapes(tuple(b1), tuple(b2))
    nb = len(batch)
    b1a = (1,) * (nb - len(b1)) + tuple(b1)
    b2a = (1,) * (nb - len(b2)) + tuple(b2)

    f = 0
    while f < nb and b2a[nb - 1 - f] == 1:
        f += 1
    lead, fold = batch[:nb - f], batch[nb - f:]
    fold_m = math.prod(fold) * M

    if tuple(b1a[:nb - f]) != tuple(lead):
        # TODO(synk): rare partial broadcast of x1 over the lead batch axes;
        # materialized here (the common shared-x2 case never takes this path).
        x1 = jnp.broadcast_to(x1, batch + (M, K))
    x1f = x1.reshape(lead + (fold_m, K))

    if tuple(b2a[:nb - f]) != tuple(lead):
        # TODO(synk): rare partial broadcast of x2 over the lead batch axes.
        x2 = jnp.broadcast_to(x2, lead + (1,) * f + (K, N))
    x2f = x2.reshape(lead + (K, N))

    return x1f, x2f, batch, lead, M, fold_m, K, N


# ------------------------------ wrapper --------------------------------------


def our_matmul_with_shifted_relu(x1, x2, keep_frac=0.5, sparse_mode="norm", *,
                                 block_b=None, block_m=None, block_n=None,
                                 block_k=None):
    """Forward of OurMatMulWithShiftedRelu: x1 @ x2 with torch.matmul batch
    broadcasting.  keep_frac / sparse_mode only affect the (unimplemented)
    backward activation-compression path.  block_* are manual tile overrides.
    """
    del keep_frac, sparse_mode  # forward output is exactly input1.matmul(x2)

    out_dtype = jnp.result_type(x1.dtype, x2.dtype)
    if not jnp.issubdtype(out_dtype, jnp.floating):
        raise TypeError("only floating-point inputs are supported "
                        f"(got {x1.dtype} x {x2.dtype})")

    # Inputs keep their native dtypes (bf16 stays bf16 in HBM/VMEM); the MXU
    # accumulates in f32 and the output cast happens in the kernel epilogue.
    x1f, x2f, batch, lead, M, Mf, K, N = _fold_broadcast_batches(x1, x2)
    BH = math.prod(lead)
    x1f = x1f.reshape(BH, Mf, K)
    x2f = x2f.reshape(BH, K, N)

    i1 = jnp.dtype(x1.dtype).itemsize
    i2 = jnp.dtype(x2.dtype).itemsize
    osz = jnp.dtype(out_dtype).itemsize
    gp = _generation_params()

    # ---- tile selection ------------------------------------------------
    tk = block_k if block_k is not None else _pick_tk(K, gp["max_tk"])
    tm = block_m if block_m is not None else (Mf if Mf <= gp["max_tm"]
                                              else gp["max_tm"])

    # Lane-dense output stores for small head dims: pad N up to 128 lanes
    # (gated to small outputs so the extra bytes never matter).
    lane_pad = (block_n is None and N < 128
                and BH * Mf * 128 * osz <= _LANE_PAD_MAX_OUT_BYTES)
    if lane_pad:
        x2f = jnp.pad(x2f, ((0, 0), (0, 0), (0, 128 - N)))
    Nio = 128 if lane_pad else N
    tn = block_n if block_n is not None else (Nio if Nio <= gp["max_tn"]
                                              else gp["max_tn"])

    # Zero-pad only the contraction axis, and only when no divisor-friendly
    # tk exists; ragged batch/M/N edge blocks are handled by Pallas OOB
    # masking (overhang reads are unused, overhang writes are discarded).
    Kp = _round_up(K, tk)
    if Kp != K:
        x1f = jnp.pad(x1f, ((0, 0), (0, 0), (0, Kp - K)))
        x2f = jnp.pad(x2f, ((0, 0), (0, Kp - K), (0, 0)))
    nk = Kp // tk

    acc_into_out = nk > 1 and out_dtype == jnp.float32
    use_scratch = nk > 1 and not acc_into_out

    # ---- batch-block selection -------------------------------------------
    per_step = (2 * i1 * tm * tk + 2 * i2 * tk * tn       # dbl-buffered inputs
                + (1 if nk > 1 else 2) * osz * tm * tn    # output (resident
                                                          #   across K if nk>1)
                + (4 * tm * tn if use_scratch else 0))    # f32 accumulator
    if block_b is not None:
        bb = max(1, block_b)
    else:
        bb = max(1, min(BH, _MAX_BB, gp["tile_budget"] // per_step))
        # keep >= 2 'parallel' grid points so both v7x TensorCores get work
        nm, nn = pl.cdiv(Mf, tm), pl.cdiv(Nio, tn)
        if nm * nn < _MIN_PARALLEL_POINTS and BH >= _MIN_PARALLEL_POINTS:
            bb = min(bb, pl.cdiv(BH, _MIN_PARALLEL_POINTS))

    vmem_need = bb * per_step
    if vmem_need > gp["vmem_cap"]:
        raise ValueError(
            f"requested tiles need ~{vmem_need >> 20} MiB of VMEM which "
            f"exceeds the {gp['vmem_cap'] >> 20} MiB cap for this TPU "
            "generation; use smaller block_* overrides")
    vmem_limit = int(min(max(3 * vmem_need // 2, 32 << 20), gp["vmem_cap"]))

    grid = (pl.cdiv(BH, bb), pl.cdiv(Mf, tm), pl.cdiv(Nio, tn), nk)

    in_specs = [
        pl.BlockSpec((bb, tm, tk), lambda b, m, n, k: (b, m, k)),
        pl.BlockSpec((bb, tk, tn), lambda b, m, n, k: (b, k, n)),
    ]
    out_specs = pl.BlockSpec((bb, tm, tn), lambda b, m, n, k: (b, m, n))

    if nk == 1:
        kernel, scratch = _bmm_kernel, []
    elif acc_into_out:
        kernel, scratch = _bmm_acc_out_kernel, []
    else:
        kernel, scratch = _bmm_acc_scratch_kernel, [
            pltpu.VMEM((bb, tm, tn), jnp.float32)]

    cost = pl.CostEstimate(
        flops=2 * BH * Mf * N * K,
        transcendentals=0,
        bytes_accessed=int(i1 * x1f.size + i2 * x2f.size + osz * BH * Mf * N),
    )

    out = pl.pallas_call(
        kernel,
        out_shape=jax.ShapeDtypeStruct((BH, Mf, Nio), out_dtype),
        grid_spec=pltpu.PrefetchScalarGridSpec(
            num_scalar_prefetch=0,
            grid=grid,
            in_specs=in_specs,
            out_specs=out_specs,
            scratch_shapes=scratch,
        ),
        compiler_params=pltpu.CompilerParams(
            dimension_semantics=("parallel", "parallel", "parallel",
                                 "arbitrary"),
            vmem_limit_bytes=vmem_limit,
        ),
        cost_estimate=cost,
    )(x1f, x2f)

    if lane_pad:
        out = out[:, :, :N]
    return out.reshape(tuple(batch) + (M, N))


# ------------------------------- demo ----------------------------------------

if __name__ == "__main__":
    key = jax.random.PRNGKey(0)
    k1, k2, k3, k4, k5, k6 = jax.random.split(key, 6)

    # 1) BERT-attention-like shapes: probs [B,H,S,S] @ values [B,H,S,D].
    B, H, S, D = 2, 4, 8, 32
    x1 = jax.random.normal(k1, (B, H, S, S), dtype=jnp.float32)
    x2 = jax.random.normal(k2, (B, H, S, D), dtype=jnp.float32)
    y = jax.block_until_ready(our_matmul_with_shifted_relu(x1, x2))
    assert y.shape == (B, H, S, D)
    assert jnp.allclose(y, jnp.matmul(x1, x2), atol=1e-3, rtol=1e-3), \
        "mismatch vs reference (main path)"

    # 2) Forced K tiling exercises the accumulate-into-output (f32) path.
    a = jax.random.normal(k3, (1, 2, 8, 256), dtype=jnp.float32)
    b = jax.random.normal(k4, (1, 2, 256, 32), dtype=jnp.float32)
    y2 = jax.block_until_ready(our_matmul_with_shifted_relu(a, b, block_k=128))
    assert jnp.allclose(y2, jnp.matmul(a, b), atol=1e-3, rtol=1e-3), \
        "mismatch vs reference (K-tiled f32 path)"

    # 3) Broadcast batch dims (x2 shared across heads): folded into M, no
    #    HBM-materialized copy of x2.
    x2s = x2[:, :1]  # (B, 1, S, D)
    y3 = jax.block_until_ready(our_matmul_with_shifted_relu(x1, x2s))
    assert y3.shape == (B, H, S, D)
    assert jnp.allclose(y3, jnp.matmul(x1, x2s), atol=1e-3, rtol=1e-3), \
        "mismatch vs reference (shared-x2 fold path)"

    # 4) bf16 inputs with K tiling exercise the f32-scratch accumulator path
    #    (native bf16 HBM traffic, f32 MXU accumulation, bf16 epilogue cast).
    ab = jax.random.normal(k5, (2, 2, 16, 256), dtype=jnp.bfloat16)
    bbm = jax.random.normal(k6, (2, 2, 256, 64), dtype=jnp.bfloat16)
    y4 = jax.block_until_ready(
        our_matmul_with_shifted_relu(ab, bbm, block_k=128))
    ref4 = jnp.matmul(ab.astype(jnp.float32), bbm.astype(jnp.float32))
    assert y4.dtype == jnp.bfloat16
    assert jnp.allclose(y4.astype(jnp.float32), ref4, atol=2e-1, rtol=2e-2), \
        "mismatch vs reference (bf16 K-tiled path)"

    print("KERNEL_OK")
</pallas_src>

<mosaic_0001>
module attributes {stable_mosaic.version = 11 : i64} {
  func.func @_bmm_kernel(%arg0: i32, %arg1: i32, %arg2: i32, %arg3: i32, %arg4: memref<4x8x8xf32, #tpu.memory_space<vmem>>, %arg5: memref<4x8x128xf32, #tpu.memory_space<vmem>>, %arg6: memref<4x8x128xf32, #tpu.memory_space<vmem>>) attributes {dimension_semantics = [#tpu.dimension_semantics<parallel>, #tpu.dimension_semantics<parallel>, #tpu.dimension_semantics<parallel>, #tpu.dimension_semantics<arbitrary>], iteration_bounds = array<i64: 2, 1, 1, 1>, scalar_prefetch = 0 : i64, scratch_operands = 0 : i64, tpu.core_type = #tpu.core_type<tc>, window_params = [{transform_indices = @transform_0, window_bounds = array<i64: 4, 8, 8>}, {transform_indices = @transform_1, window_bounds = array<i64: 4, 8, 128>}, {transform_indices = @transform_2, window_bounds = array<i64: 4, 8, 128>}]} {
    %c0 = arith.constant 0 : index
    %c0_0 = arith.constant 0 : index
    %c0_1 = arith.constant 0 : index
    %0 = vector.load %arg4[%c0, %c0_0, %c0_1] : memref<4x8x8xf32, #tpu.memory_space<vmem>>, vector<4x8x8xf32>
    %c0_2 = arith.constant 0 : index
    %c0_3 = arith.constant 0 : index
    %c0_4 = arith.constant 0 : index
    %1 = vector.load %arg5[%c0_2, %c0_3, %c0_4] : memref<4x8x128xf32, #tpu.memory_space<vmem>>, vector<4x8x128xf32>
    "tpu.trace_start"() <{level = 10 : i32, message = "bmk,bkn->bmn"}> : () -> ()
    %cst = arith.constant dense<0.000000e+00> : vector<4x8x128xf32>
    %2 = tpu.matmul %0, %1, %cst {dimension_numbers = #tpu.dot_dimension_numbers<[2], [1], [1], [2], [0, 0, 0, 1, 1, 2], [0], [0]>} : vector<4x8x8xf32>, vector<4x8x128xf32>, vector<4x8x128xf32> -> vector<4x8x128xf32>
    "tpu.trace_stop"() : () -> ()
    %c0_5 = arith.constant 0 : index
    %c0_6 = arith.constant 0 : index
    %c0_7 = arith.constant 0 : index
    %3 = vector.load %arg6[%c0_5, %c0_6, %c0_7] : memref<4x8x128xf32, #tpu.memory_space<vmem>>, vector<4x8x128xf32>
    tpu.vector_store %arg6[%c0_5, %c0_6, %c0_7], %2 {strides = array<i32>} : memref<4x8x128xf32, #tpu.memory_space<vmem>>, vector<4x8x128xf32>,
    return
  }
  func.func @transform_0(%arg0: i32, %arg1: i32, %arg2: i32, %arg3: i32) -> (i32, i32, i32) {
    %c0_i32 = arith.constant 0 : i32
    return %arg0, %arg1, %arg3 : i32, i32, i32
  }
  func.func @transform_1(%arg0: i32, %arg1: i32, %arg2: i32, %arg3: i32) -> (i32, i32, i32) {
    %c0_i32 = arith.constant 0 : i32
    return %arg0, %arg3, %arg2 : i32, i32, i32
  }
  func.func @transform_2(%arg0: i32, %arg1: i32, %arg2: i32, %arg3: i32) -> (i32, i32, i32) {
    %c0_i32 = arith.constant 0 : i32
    return %arg0, %arg1, %arg2 : i32, i32, i32
  }
}

</mosaic_0001>

<llo_original>
// kernel: tpu_custom_call.1
$region0: #{tpu_custom_call.1}
  #allocation0 [shape = 'u32[]', space=smem, size = 0x4, offset = 0x4, fixed_abs, tag = 'smem constant byte address 0x4 - core index']
  #allocation1 [shape = 'u32[144,128]{1,0:T(1,128)}', space=vmem, size = 0x12000, scoped, tag = 'internal scratch']
  %s0 = inlined_call_operand.hbm [shape: f32[8,8,8], index: 0, kind: input, shape index: {}]
  %s1 = inlined_call_operand.hbm [shape: f32[8,8,128], index: 1, kind: input, shape index: {}]
  %s2 = inlined_call_operand.hbm [shape: f32[8,8,128], index: 2, kind: output, shape index: {}]
  %s3 = sld [smem:[#allocation0]]
  $region49: #{tpu_custom_call.1} parent=0
    _
  %s5 = ssub.s32 1, %s3
  %s6 = scalar_select 0, %s5, %s3
  $region1: #{tpu_custom_call.1} parent=0
    #allocation2 [shape = 'u8[32768]{0}', space=vmem, size = 0x8000, scoped, tag = 'input window, operand 0']
    #allocation3 [shape = 's32[2]{0}', space=sflag, size = 0x8, scoped, tag = 'scoped memory for tpu_custom_call.1']
    #allocation4 [shape = 's32[2]{0}', space=sflag, size = 0x8, scoped, tag = 'scoped memory for tpu_custom_call.1']
    #allocation5 [shape = 'u8[32768]{0}', space=vmem, size = 0x8000, scoped, tag = 'input window, operand 1']
    #allocation6 [shape = 's32[2]{0}', space=sflag, size = 0x8, scoped, tag = 'scoped memory for tpu_custom_call.1']
    #allocation7 [shape = 'u8[32768]{0}', space=vmem, size = 0x8000, scoped, tag = 'output window, operand 0']
    %7 = vsyncpa [#allocation3], 0
    %s8 = scalar_lea.sflag [#allocation3], 1
    %9 = vsyncpa %s8, 0
    %10 = vsyncpa [#allocation6], 0
    %s11 = scalar_lea.sflag [#allocation6], 1
    %12 = vsyncpa %s11, 0
    %13 = vsyncpa [#allocation4], 0
    %s14 = scalar_lea.sflag [#allocation4], 1
    %15 = vsyncpa %s14, 0
    loop: start=0, step=1, limit=4
    $region2: #{tpu_custom_call.1} parent=1 // loop_pre_header
      _
    $region3: #{tpu_custom_call.1} parent=1 // loop_header
      %s17 = sphi 0, %s21
      %p18 = scmp.ge.s32.totalorder %s17, 4
      %s24 = sphi 0, %s50
      %s25 = sphi 0, %s46
      %s26 = sphi 0, %s42
      %s27 = sphi 0, %s38
      %s28 = sphi 0, %s24
      %s29 = sphi 0, %s25
      %s30 = sphi 0, %s26
      %s31 = sphi 0, %s27
      %s32 = sphi 0, %s28
      %s33 = sphi 0, %s29
      %s34 = sphi 0, %s30
      %s35 = sphi 0, %s31
      %s57 = sphi 0, %s59
      %s60 = sphi 0, %s57
      %s61 = sphi 0, %s60
      %s77 = sphi 0, %s61
      %s87 = sphi 0, %s89
      %s90 = sphi 0, %s87
      %s91 = sphi 0, %s90
      %s107 = sphi 0, %s91
      %s117 = sphi 0, %s119
      %s120 = sphi 0, %s117
      %s121 = sphi 0, %s120
      %s137 = sphi 0, %s121
    $region4: #{tpu_custom_call.1} parent=1 // loop_header_branch
      %20 = sbr.rel (%p18) target = $region8
    $region5: #{tpu_custom_call.1} parent=1 // loop_body
      %s22 = ssub.s32 %s17, 1
      %s23 = ssub.s32 %s17, 2
      %s36 = sadd.s32 1, %s27
      %p37 = scmp.ge.s32.totalorder %s36, 1
      %s38 = scalar_select %p37, 0, %s36
      %s39 = sadd.s32 1, %s26
      %s40 = scalar_select %p37, %s39, %s26
      %p41 = scmp.ge.s32.totalorder %s40, 1
      %s42 = scalar_select %p41, 0, %s40
      %s43 = sadd.s32 1, %s25
      %s44 = scalar_select %p41, %s43, %s25
      %p45 = scmp.ge.s32.totalorder %s44, 1
      %s46 = scalar_select %p45, 0, %s44
      %s47 = sadd.s32 1, %s24
      %s48 = scalar_select %p45, %s47, %s24
      %p49 = scmp.ge.s32.totalorder %s48, 2
      %s50 = scalar_select %p49, 0, %s48
      %s51 = ssub.s32 %s24, %s50
      %s52 = ssub.s32 %s25, %s46
      %s53 = sor.u32 %s51, %s52
      %s54 = ssub.s32 %s27, %s38
      %s55 = sor.u32 %s53, %s54
      %p56 = scmp.eq.s32.totalorder %s55, 0
      %s58 = sadd.s32 %s57, 1
      %s59 = scalar_select %p56, %s57, %s58
      %p62 = pneg %p56
      %p63 = scmp.eq.s32.totalorder %s17, 1
      %p64 = por %p62, %p63
      %p65 = scmp.ne.s32.totalorder %s57, %s60
      %p66 = scmp.eq.s32.totalorder %s17, 0
      %p67 = por %p65, %p66
      %p68 = scmp.ne.s32.totalorder %s57, %s60
      %p69 = scmp.eq.s32.totalorder %s22, 1
      %p70 = por %p68, %p69
      %p71 = scmp.ne.s32.totalorder %s60, %s61
      %p72 = scmp.eq.s32.totalorder %s22, 0
      %p73 = por %p71, %p72
      %p74 = scmp.ne.s32.totalorder %s60, %s61
      %p75 = scmp.eq.s32.totalorder %s23, 1
      %p76 = por %p74, %p75
      %p78 = scmp.ne.s32.totalorder %s61, %s77
      %p79 = scmp.eq.s32.totalorder %s23, 0
      %p80 = por %p78, %p79
      %s81 = ssub.s32 %s24, %s50
      %s82 = ssub.s32 %s27, %s38
      %s83 = sor.u32 %s81, %s82
      %s84 = ssub.s32 %s26, %s42
      %s85 = sor.u32 %s83, %s84
      %p86 = scmp.eq.s32.totalorder %s85, 0
      %s88 = sadd.s32 %s87, 1
      %s89 = scalar_select %p86, %s87, %s88
      %p92 = pneg %p86
      %p93 = scmp.eq.s32.totalorder %s17, 1
      %p94 = por %p92, %p93
      %p95 = scmp.ne.s32.totalorder %s87, %s90
      %p96 = scmp.eq.s32.totalorder %s17, 0
      %p97 = por %p95, %p96
      %p98 = scmp.ne.s32.totalorder %s87, %s90
      %p99 = scmp.eq.s32.totalorder %s22, 1
      %p100 = por %p98, %p99
      %p101 = scmp.ne.s32.totalorder %s90, %s91
      %p102 = scmp.eq.s32.totalorder %s22, 0
      %p103 = por %p101, %p102
      %p104 = scmp.ne.s32.totalorder %s90, %s91
      %p105 = scmp.eq.s32.totalorder %s23, 1
      %p106 = por %p104, %p105
      %p108 = scmp.ne.s32.totalorder %s91, %s107
      %p109 = scmp.eq.s32.totalorder %s23, 0
      %p110 = por %p108, %p109
      %s111 = ssub.s32 %s24, %s50
      %s112 = ssub.s32 %s25, %s46
      %s113 = sor.u32 %s111, %s112
      %s114 = ssub.s32 %s26, %s42
      %s115 = sor.u32 %s113, %s114
      %p116 = scmp.eq.s32.totalorder %s115, 0
      %s118 = sadd.s32 %s117, 1
      %s119 = scalar_select %p116, %s117, %s118
      %p122 = pneg %p116
      %p123 = scmp.eq.s32.totalorder %s17, 1
      %p124 = por %p122, %p123
      %p125 = scmp.ne.s32.totalorder %s117, %s120
      %p126 = scmp.eq.s32.totalorder %s17, 0
      %p127 = por %p125, %p126
      %p128 = scmp.ne.s32.totalorder %s117, %s120
      %p129 = scmp.eq.s32.totalorder %s22, 1
      %p130 = por %p128, %p129
      %p131 = scmp.ne.s32.totalorder %s120, %s121
      %p132 = scmp.eq.s32.totalorder %s22, 0
      %p133 = por %p131, %p132
      %p134 = scmp.ne.s32.totalorder %s120, %s121
      %p135 = scmp.eq.s32.totalorder %s23, 1
      %p136 = por %p134, %p135
      %p138 = scmp.ne.s32.totalorder %s121, %s137
      %p139 = scmp.eq.s32.totalorder %s23, 0
      %p140 = por %p138, %p139
      %p141 = scmp.le.s32.totalorder 1, %s17
      %p142 = scmp.lt.s32.totalorder %s17, 3
      %p143 = pnand %p141, %p142
      %p144 = pneg %p143
      // Predicated region
      $region9: #{tpu_custom_call.1} parent=5 // pred_check
        _
      $region10: #{tpu_custom_call.1} parent=5 // pred_check_branch
        %146 = sbr.rel (%p143) target = $region12
      $region11: #{tpu_custom_call.1} parent=5 // pred_region
        %s147 = ssub.s32 %s17, 1
      $region12: #{tpu_custom_call.1} parent=5 // pred_fallthru
        _
      %p148 = scmp.lt.s32.totalorder %s17, 2
      // Predicated region
      $region13: #{tpu_custom_call.1} parent=5 // pred_check
        %p149 = pneg %p148
      $region14: #{tpu_custom_call.1} parent=5 // pred_check_branch
        %151 = sbr.rel (%p149) target = $region16
      $region15: #{tpu_custom_call.1} parent=5 // pred_region
        // Predicated region
        $region17: #{tpu_custom_call.1} parent=15 // pred_check
          %p152 = pneg %p67
        $region18: #{tpu_custom_call.1} parent=15 // pred_check_branch
          %154 = sbr.rel (%p152) target = $region20
        $region19: #{tpu_custom_call.1} parent=15 // pred_region
          %s155 = sand.u32 %s57, 1
          %s156 = scalar_lea.sflag [#allocation3], %s155
          %s157 = sand.u32 %s57, 1
          %s158 = smul.addr %s157, 32
          %s159 = scalar_lea.vmem [#allocation2], %s158
          %s160 = smul.u32 4, %s24
          %s162 = ssub.s32 512, 512
          %163 = vsyncadd %s156, %s162
          %s164 = sadd.s32 %s27, %s25
          %s165 = sadd.s32 %s164, %s160
          %s166 = smul.addr %s165, 128
          %s167 = scalar_lea.hbm %s0, %s166
          %s168 = sshll.u32 %s159, 4
          %s169 = int_to_ptr.vmem [resolvable:$true] %s168
          %174 = dma.hbm_to_vmem [thread:$0]  %s167, 512, %s169, %s156, 128, 128, 8
        $region20: #{tpu_custom_call.1} parent=15 // pred_fallthru
          _
        // Predicated region
        $region21: #{tpu_custom_call.1} parent=15 // pred_check
          %p175 = pneg %p97
        $region22: #{tpu_custom_call.1} parent=15 // pred_check_branch
          %177 = sbr.rel (%p175) target = $region24
        $region23: #{tpu_custom_call.1} parent=15 // pred_region
          %s178 = sand.u32 %s87, 1
          %s179 = scalar_lea.sflag [#allocation6], %s178
          %s180 = sand.u32 %s87, 1
          %s181 = smul.addr %s180, 32
          %s182 = scalar_lea.vmem [#allocation5], %s181
          %s183 = smul.u32 4, %s24
          %s185 = ssub.s32 512, 512
          %186 = vsyncadd %s179, %s185
          %s187 = sadd.s32 %s26, %s27
          %s188 = sadd.s32 %s187, %s183
          %s189 = smul.addr %s188, 128
          %s190 = scalar_lea.hbm %s1, %s189
          %s191 = sshll.u32 %s182, 4
          %s192 = int_to_ptr.vmem [resolvable:$true] %s191
          %197 = dma.hbm_to_vmem [thread:$0]  %s190, 512, %s192, %s179, 128, 128, 8
        $region24: #{tpu_custom_call.1} parent=15 // pred_fallthru
          _
      $region16: #{tpu_custom_call.1} parent=5 // pred_fallthru
        _
      %p198 = scmp.le.s32.totalorder 1, %s17
      %p199 = scmp.lt.s32.totalorder %s17, 3
      %p200 = pnand %p198, %p199
      %p201 = pneg %p200
      // Predicated region
      $region25: #{tpu_custom_call.1} parent=5 // pred_check
        _
      $region26: #{tpu_custom_call.1} parent=5 // pred_check_branch
        %203 = sbr.rel (%p200) target = $region28
      $region27: #{tpu_custom_call.1} parent=5 // pred_region
        %s204 = ssub.s32 %s17, 1
        %s205 = sand.u32 %s60, 1
        %s206 = scalar_lea.sflag [#allocation3], %s205
        %s207 = sand.u32 %s60, 1
        %s208 = smul.addr %s207, 32
        %s209 = scalar_lea.vmem [#allocation2], %s208
        // Predicated region
        $region29: #{tpu_custom_call.1} parent=27 // pred_check
          %p210 = pneg %p73
        $region30: #{tpu_custom_call.1} parent=27 // pred_check_branch
          %212 = sbr.rel (%p210) target = $region32
        $region31: #{tpu_custom_call.1} parent=27 // pred_region
          %213 = dma.done %s206, 512
        $region32: #{tpu_custom_call.1} parent=27 // pred_fallthru
          _
        %s214 = sand.u32 %s90, 1
        %s215 = scalar_lea.sflag [#allocation6], %s214
        %s216 = sand.u32 %s90, 1
        %s217 = smul.addr %s216, 32
        %s218 = scalar_lea.vmem [#allocation5], %s217
        // Predicated region
        $region33: #{tpu_custom_call.1} parent=27 // pred_check
          %p219 = pneg %p103
        $region34: #{tpu_custom_call.1} parent=27 // pred_check_branch
          %221 = sbr.rel (%p219) target = $region36
        $region35: #{tpu_custom_call.1} parent=27 // pred_region
          %222 = dma.done %s215, 512
        $region36: #{tpu_custom_call.1} parent=27 // pred_fallthru
          _
        %s223 = sand.u32 %s60, 1
        %s224 = scalar_lea.sflag [#allocation3], %s223
        %s225 = sand.u32 %s60, 1
        %s226 = smul.addr %s225, 32
        %s227 = scalar_lea.vmem [#allocation2], %s226
        %p228 = pneg %p73
        %p229 = pneg %p70
        %s230 = sand.u32 %s90, 1
        %s231 = scalar_lea.sflag [#allocation6], %s230
        %s232 = sand.u32 %s90, 1
        %s233 = smul.addr %s232, 32
        %s234 = scalar_lea.vmem [#allocation5], %s233
        %p235 = pneg %p103
        %p236 = pneg %p100
        %p237 = pneg %p133
        %p238 = pneg %p130
        %s239 = sand.u32 %s120, 1
        %s240 = scalar_lea.sflag [#allocation4], %s239
        %s241 = sand.u32 %s120, 1
        %s242 = smul.addr %s241, 32
        %s243 = scalar_lea.vmem [#allocation7], %s242
        %s244 = smul.u32 4, %s28
        %s245 = smul.u32 4, %s28
        %s246 = smul.u32 4, %s28
        %v247 = vld [vmem:[%s209] sm:$0xff]
        %v248 = vld [vmem:[%s209 + $0x8] sm:$0xff]
        %v249 = vld [vmem:[%s209 + $0x10] sm:$0xff]
        %v250 = vld [vmem:[%s209 + $0x18] sm:$0xff]
        %v251 = vld [vmem:[%s218] sm:$0xff]
        %v252 = vld [vmem:[%s218 + $0x8] sm:$0xff]
        %v253 = vld [vmem:[%s218 + $0x10] sm:$0xff]
        %v254 = vld [vmem:[%s218 + $0x18] sm:$0xff]
        %vm255 = vcmask 64512
        %v257 = vsel %vm255, %v247, 0
        %259 = vmatprep.subr.mxu0 0.0
        %260 = vmatpush1.msra.mxu0 %v251
        %261 = vmatprep.subr.mxu0 0.0
        %262 = vmatpush1.msra.mxu0 0.0
        %263 = vmatprep.subr.mxu0 0.0
        %264 = vmatpush1.msra.mxu0 0.0
        %265 = vmatprep.subr.mxu0 0.0
        %266 = vmatpush1.msra.mxu0 0.0
        %267 = vmatprep.subr.mxu0 0.0
        %268 = vmatpush1.msra.mxu0 0.0
        %269 = vmatprep.subr.mxu0 0.0
        %270 = vmatpush1.msra.mxu0 0.0
        %271 = vmatprep.subr.mxu0 0.0
        %272 = vmatpush1.msra.mxu0 0.0
        %273 = vmatprep.subr.mxu0 0.0
        %274 = vmatpush1.msra.mxu0 0.0
        %275 = vmatprep.subr.mxu0 0.0
        %276 = vmatpush1.msra.mxu0 0.0
        %277 = vmatprep.subr.mxu0 0.0
        %278 = vmatpush1.msra.mxu0 0.0
        %279 = vmatprep.subr.mxu0 0.0
        %280 = vmatpush1.msra.mxu0 0.0
        %281 = vmatprep.subr.mxu0 0.0
        %282 = vmatpush1.msra.mxu0 0.0
        %283 = vmatprep.subr.mxu0 0.0
        %284 = vmatpush1.msra.mxu0 0.0
        %285 = vmatprep.subr.mxu0 0.0
        %286 = vmatpush1.msra.mxu0 0.0
        %287 = vmatprep.subr.mxu0 0.0
        %288 = vmatpush1.msra.mxu0 0.0
        %289 = vmatprep.subr.mxu0 0.0
        %290 = vmatpush1.msra.mxu0 0.0
        %291 = vmatprep.subr.mxu0 0.0
        %292 = vmatpush1.msra.mxu0 0.0
        %293 = vmatprep.subr.mxu0 0.0
        %294 = vmatpush1.msra.mxu0 0.0
        %295 = vmatprep.subr.mxu0 0.0
        %296 = vmatpush1.msra.mxu0 0.0
        %297 = vmatprep.subr.mxu0 0.0
        %298 = vmatpush1.msra.mxu0 0.0
        %299 = vmatprep.subr.mxu0 0.0
        %300 = vmatpush1.msra.mxu0 0.0
        %301 = vmatprep.subr.mxu0 0.0
        %302 = vmatpush1.msra.mxu0 0.0
        %303 = vmatprep.subr.mxu0 0.0
        %304 = vmatpush1.msra.mxu0 0.0
        %305 = vmatprep.subr.mxu0 0.0
        %306 = vmatpush1.msra.mxu0 0.0
        %307 = vmatprep.subr.mxu0 0.0
        %308 = vmatpush1.msra.mxu0 0.0
        %309 = vmatprep.subr.mxu0 0.0
        %310 = vmatpush1.msra.mxu0 0.0
        %311 = vmatprep.subr.mxu0 0.0
        %312 = vmatpush1.msra.mxu0 0.0
        %313 = vmatprep.subr.mxu0 0.0
        %314 = vmatpush1.msra.mxu0 0.0
        %315 = vmatprep.subr.mxu0 0.0
        %316 = vmatpush1.msra.mxu0 0.0
        %317 = vmatprep.subr.mxu0 0.0
        %318 = vmatpush1.msra.mxu0 0.0
        %319 = vmatprep.subr.mxu0 0.0
        %320 = vmatpush1.msra.mxu0 0.0
        %321 = vmatprep.subr.mxu0 0.0
        %322 = vmatpush1.msra.mxu0 0.0
        %323 = vmatprep.mubr.f32.mxu0 0.0
        %324 = vmatmul.mubr.f32.gmra.mrb[0].mxu0 %v257
        %v325 = vpop.f32.mrb[0].mxu0
        %v326 = vadd.f32 0.0, %v325
        %v327 = vpop.f32.mrb[0].mxu0
        %328 = vdwg.mxu0
        %v330 = vsel %vm255, %v248, 0
        %332 = vmatprep.subr.mxu0 0.0
        %333 = vmatpush1.msra.mxu0 %v252
        %334 = vmatprep.subr.mxu0 0.0
        %335 = vmatpush1.msra.mxu0 0.0
        %336 = vmatprep.subr.mxu0 0.0
        %337 = vmatpush1.msra.mxu0 0.0
        %338 = vmatprep.subr.mxu0 0.0
        %339 = vmatpush1.msra.mxu0 0.0
        %340 = vmatprep.subr.mxu0 0.0
        %341 = vmatpush1.msra.mxu0 0.0
        %342 = vmatprep.subr.mxu0 0.0
        %343 = vmatpush1.msra.mxu0 0.0
        %344 = vmatprep.subr.mxu0 0.0
        %345 = vmatpush1.msra.mxu0 0.0
        %346 = vmatprep.subr.mxu0 0.0
        %347 = vmatpush1.msra.mxu0 0.0
        %348 = vmatprep.subr.mxu0 0.0
        %349 = vmatpush1.msra.mxu0 0.0
        %350 = vmatprep.subr.mxu0 0.0
        %351 = vmatpush1.msra.mxu0 0.0
        %352 = vmatprep.subr.mxu0 0.0
        %353 = vmatpush1.msra.mxu0 0.0
        %354 = vmatprep.subr.mxu0 0.0
        %355 = vmatpush1.msra.mxu0 0.0
        %356 = vmatprep.subr.mxu0 0.0
        %357 = vmatpush1.msra.mxu0 0.0
        %358 = vmatprep.subr.mxu0 0.0
        %359 = vmatpush1.msra.mxu0 0.0
        %360 = vmatprep.subr.mxu0 0.0
        %361 = vmatpush1.msra.mxu0 0.0
        %362 = vmatprep.subr.mxu0 0.0
        %363 = vmatpush1.msra.mxu0 0.0
        %364 = vmatprep.subr.mxu0 0.0
        %365 = vmatpush1.msra.mxu0 0.0
        %366 = vmatprep.subr.mxu0 0.0
        %367 = vmatpush1.msra.mxu0 0.0
        %368 = vmatprep.subr.mxu0 0.0
        %369 = vmatpush1.msra.mxu0 0.0
        %370 = vmatprep.subr.mxu0 0.0
        %371 = vmatpush1.msra.mxu0 0.0
        %372 = vmatprep.subr.mxu0 0.0
        %373 = vmatpush1.msra.mxu0 0.0
        %374 = vmatprep.subr.mxu0 0.0
        %375 = vmatpush1.msra.mxu0 0.0
        %376 = vmatprep.subr.mxu0 0.0
        %377 = vmatpush1.msra.mxu0 0.0
        %378 = vmatprep.subr.mxu0 0.0
        %379 = vmatpush1.msra.mxu0 0.0
        %380 = vmatprep.subr.mxu0 0.0
        %381 = vmatpush1.msra.mxu0 0.0
        %382 = vmatprep.subr.mxu0 0.0
        %383 = vmatpush1.msra.mxu0 0.0
        %384 = vmatprep.subr.mxu0 0.0
        %385 = vmatpush1.msra.mxu0 0.0
        %386 = vmatprep.subr.mxu0 0.0
        %387 = vmatpush1.msra.mxu0 0.0
        %388 = vmatprep.subr.mxu0 0.0
        %389 = vmatpush1.msra.mxu0 0.0
        %390 = vmatprep.subr.mxu0 0.0
        %391 = vmatpush1.msra.mxu0 0.0
        %392 = vmatprep.subr.mxu0 0.0
        %393 = vmatpush1.msra.mxu0 0.0
        %394 = vmatprep.subr.mxu0 0.0
        %395 = vmatpush1.msra.mxu0 0.0
        %396 = vmatprep.mubr.f32.mxu0 0.0
        %397 = vmatmul.mubr.f32.gmra.mrb[0].mxu0 %v330
        %v398 = vpop.f32.mrb[0].mxu0
        %v399 = vadd.f32 0.0, %v398
        %v400 = vpop.f32.mrb[0].mxu0
        %401 = vdwg.mxu0
        %v403 = vsel %vm255, %v249, 0
        %405 = vmatprep.subr.mxu0 0.0
        %406 = vmatpush1.msra.mxu0 %v253
        %407 = vmatprep.subr.mxu0 0.0
        %408 = vmatpush1.msra.mxu0 0.0
        %409 = vmatprep.subr.mxu0 0.0
        %410 = vmatpush1.msra.mxu0 0.0
        %411 = vmatprep.subr.mxu0 0.0
        %412 = vmatpush1.msra.mxu0 0.0
        %413 = vmatprep.subr.mxu0 0.0
        %414 = vmatpush1.msra.mxu0 0.0
        %415 = vmatprep.subr.mxu0 0.0
        %416 = vmatpush1.msra.mxu0 0.0
        %417 = vmatprep.subr.mxu0 0.0
        %418 = vmatpush1.msra.mxu0 0.0
        %419 = vmatprep.subr.mxu0 0.0
        %420 = vmatpush1.msra.mxu0 0.0
        %421 = vmatprep.subr.mxu0 0.0
        %422 = vmatpush1.msra.mxu0 0.0
        %423 = vmatprep.subr.mxu0 0.0
        %424 = vmatpush1.msra.mxu0 0.0
        %425 = vmatprep.subr.mxu0 0.0
        %426 = vmatpush1.msra.mxu0 0.0
        %427 = vmatprep.subr.mxu0 0.0
        %428 = vmatpush1.msra.mxu0 0.0
        %429 = vmatprep.subr.mxu0 0.0
        %430 = vmatpush1.msra.mxu0 0.0
        %431 = vmatprep.subr.mxu0 0.0
        %432 = vmatpush1.msra.mxu0 0.0
        %433 = vmatprep.subr.mxu0 0.0
        %434 = vmatpush1.msra.mxu0 0.0
        %435 = vmatprep.subr.mxu0 0.0
        %436 = vmatpush1.msra.mxu0 0.0
        %437 = vmatprep.subr.mxu0 0.0
        %438 = vmatpush1.msra.mxu0 0.0
        %439 = vmatprep.subr.mxu0 0.0
        %440 = vmatpush1.msra.mxu0 0.0
        %441 = vmatprep.subr.mxu0 0.0
        %442 = vmatpush1.msra.mxu0 0.0
        %443 = vmatprep.subr.mxu0 0.0
        %444 = vmatpush1.msra.mxu0 0.0
        %445 = vmatprep.subr.mxu0 0.0
        %446 = vmatpush1.msra.mxu0 0.0
        %447 = vmatprep.subr.mxu0 0.0
        %448 = vmatpush1.msra.mxu0 0.0
        %449 = vmatprep.subr.mxu0 0.0
        %450 = vmatpush1.msra.mxu0 0.0
        %451 = vmatprep.subr.mxu0 0.0
        %452 = vmatpush1.msra.mxu0 0.0
        %453 = vmatprep.subr.mxu0 0.0
        %454 = vmatpush1.msra.mxu0 0.0
        %455 = vmatprep.subr.mxu0 0.0
        %456 = vmatpush1.msra.mxu0 0.0
        %457 = vmatprep.subr.mxu0 0.0
        %458 = vmatpush1.msra.mxu0 0.0
        %459 = vmatprep.subr.mxu0 0.0
        %460 = vmatpush1.msra.mxu0 0.0
        %461 = vmatprep.subr.mxu0 0.0
        %462 = vmatpush1.msra.mxu0 0.0
        %463 = vmatprep.subr.mxu0 0.0
        %464 = vmatpush1.msra.mxu0 0.0
        %465 = vmatprep.subr.mxu0 0.0
        %466 = vmatpush1.msra.mxu0 0.0
        %467 = vmatprep.subr.mxu0 0.0
        %468 = vmatpush1.msra.mxu0 0.0
        %469 = vmatprep.mubr.f32.mxu0 0.0
        %470 = vmatmul.mubr.f32.gmra.mrb[0].mxu0 %v403
        %v471 = vpop.f32.mrb[0].mxu0
        %v472 = vadd.f32 0.0, %v471
        %v473 = vpop.f32.mrb[0].mxu0
        %474 = vdwg.mxu0
        %v476 = vsel %vm255, %v250, 0
        %478 = vmatprep.subr.mxu0 0.0
        %479 = vmatpush1.msra.mxu0 %v254
        %480 = vmatprep.subr.mxu0 0.0
        %481 = vmatpush1.msra.mxu0 0.0
        %482 = vmatprep.subr.mxu0 0.0
        %483 = vmatpush1.msra.mxu0 0.0
        %484 = vmatprep.subr.mxu0 0.0
        %485 = vmatpush1.msra.mxu0 0.0
        %486 = vmatprep.subr.mxu0 0.0
        %487 = vmatpush1.msra.mxu0 0.0
        %488 = vmatprep.subr.mxu0 0.0
        %489 = vmatpush1.msra.mxu0 0.0
        %490 = vmatprep.subr.mxu0 0.0
        %491 = vmatpush1.msra.mxu0 0.0
        %492 = vmatprep.subr.mxu0 0.0
        %493 = vmatpush1.msra.mxu0 0.0
        %494 = vmatprep.subr.mxu0 0.0
        %495 = vmatpush1.msra.mxu0 0.0
        %496 = vmatprep.subr.mxu0 0.0
        %497 = vmatpush1.msra.mxu0 0.0
        %498 = vmatprep.subr.mxu0 0.0
        %499 = vmatpush1.msra.mxu0 0.0
        %500 = vmatprep.subr.mxu0 0.0
        %501 = vmatpush1.msra.mxu0 0.0
        %502 = vmatprep.subr.mxu0 0.0
        %503 = vmatpush1.msra.mxu0 0.0
        %504 = vmatprep.subr.mxu0 0.0
        %505 = vmatpush1.msra.mxu0 0.0
        %506 = vmatprep.subr.mxu0 0.0
        %507 = vmatpush1.msra.mxu0 0.0
        %508 = vmatprep.subr.mxu0 0.0
        %509 = vmatpush1.msra.mxu0 0.0
        %510 = vmatprep.subr.mxu0 0.0
        %511 = vmatpush1.msra.mxu0 0.0
        %512 = vmatprep.subr.mxu0 0.0
        %513 = vmatpush1.msra.mxu0 0.0
        %514 = vmatprep.subr.mxu0 0.0
        %515 = vmatpush1.msra.mxu0 0.0
        %516 = vmatprep.subr.mxu0 0.0
        %517 = vmatpush1.msra.mxu0 0.0
        %518 = vmatprep.subr.mxu0 0.0
        %519 = vmatpush1.msra.mxu0 0.0
        %520 = vmatprep.subr.mxu0 0.0
        %521 = vmatpush1.msra.mxu0 0.0
        %522 = vmatprep.subr.mxu0 0.0
        %523 = vmatpush1.msra.mxu0 0.0
        %524 = vmatprep.subr.mxu0 0.0
        %525 = vmatpush1.msra.mxu0 0.0
        %526 = vmatprep.subr.mxu0 0.0
        %527 = vmatpush1.msra.mxu0 0.0
        %528 = vmatprep.subr.mxu0 0.0
        %529 = vmatpush1.msra.mxu0 0.0
        %530 = vmatprep.subr.mxu0 0.0
        %531 = vmatpush1.msra.mxu0 0.0
        %532 = vmatprep.subr.mxu0 0.0
        %533 = vmatpush1.msra.mxu0 0.0
        %534 = vmatprep.subr.mxu0 0.0
        %535 = vmatpush1.msra.mxu0 0.0
        %536 = vmatprep.subr.mxu0 0.0
        %537 = vmatpush1.msra.mxu0 0.0
        %538 = vmatprep.subr.mxu0 0.0
        %539 = vmatpush1.msra.mxu0 0.0
        %540 = vmatprep.subr.mxu0 0.0
        %541 = vmatpush1.msra.mxu0 0.0
        %542 = vmatprep.mubr.f32.mxu0 0.0
        %543 = vmatmul.mubr.f32.gmra.mrb[0].mxu0 %v476
        %v544 = vpop.f32.mrb[0].mxu0
        %v545 = vadd.f32 0.0, %v544
        %v546 = vpop.f32.mrb[0].mxu0
        %547 = vdwg.mxu0
        %548 = vst [vmem:[%s243] sm:$0xff] %v326
        %549 = vst [vmem:[%s243 + $0x8] sm:$0xff] %v399
        %550 = vst [vmem:[%s243 + $0x10] sm:$0xff] %v472
        %551 = vst [vmem:[%s243 + $0x18] sm:$0xff] %v545
        %s552 = sand.u32 %s120, 1
        %s553 = scalar_lea.sflag [#allocation4], %s552
        %s554 = sand.u32 %s120, 1
        %s555 = smul.addr %s554, 32
        %s556 = scalar_lea.vmem [#allocation7], %s555
        // Predicated region
        $region37: #{tpu_custom_call.1} parent=27 // pred_check
          %p557 = pneg %p130
        $region38: #{tpu_custom_call.1} parent=27 // pred_check_branch
          %559 = sbr.rel (%p557) target = $region40
        $region39: #{tpu_custom_call.1} parent=27 // pred_region
          %s560 = smul.u32 4, %s28
          %s562 = ssub.s32 512, 512
          %563 = vsyncadd %s553, %s562
          %s564 = sadd.s32 %s30, %s29
          %s565 = sadd.s32 %s564, %s560
          %s566 = smul.addr %s565, 128
          %s567 = scalar_lea.hbm %s2, %s566
          %s568 = sshll.u32 %s556, 4
          %s569 = int_to_ptr.vmem [resolvable:$true] %s568
          %574 = dma.vmem_to_hbm [thread:$0]  %s569, 512, %s567, %s553, 128, 128, 8
        $region40: #{tpu_custom_call.1} parent=27 // pred_fallthru
          _
      $region28: #{tpu_custom_call.1} parent=5 // pred_fallthru
        _
      %p575 = scmp.le.s32.totalorder 2, %s17
      // Predicated region
      $region41: #{tpu_custom_call.1} parent=5 // pred_check
        %p576 = pneg %p575
      $region42: #{tpu_custom_call.1} parent=5 // pred_check_branch
        %578 = sbr.rel (%p576) target = $region44
      $region43: #{tpu_custom_call.1} parent=5 // pred_region
        %s579 = ssub.s32 %s17, 2
        // Predicated region
        $region45: #{tpu_custom_call.1} parent=43 // pred_check
          %p580 = pneg %p136
        $region46: #{tpu_custom_call.1} parent=43 // pred_check_branch
          %582 = sbr.rel (%p580) target = $region48
        $region47: #{tpu_custom_call.1} parent=43 // pred_region
          %s583 = sand.u32 %s121, 1
          %s584 = scalar_lea.sflag [#allocation4], %s583
          %s585 = sand.u32 %s121, 1
          %s586 = smul.addr %s585, 32
          %s587 = scalar_lea.vmem [#allocation7], %s586
          %588 = dma.done %s584, 512
        $region48: #{tpu_custom_call.1} parent=43 // pred_fallthru
          _
      $region44: #{tpu_custom_call.1} parent=5 // pred_fallthru
        _
    $region6: #{tpu_custom_call.1} parent=1 // loop_footer
      %s21 = sadd.s32 1, %s17
    $region7: #{tpu_custom_call.1} parent=1 // loop_footer_branch
      %16 = sbr.rel target = $region3
    $region8: #{tpu_custom_call.1} parent=1 // loop_exit
      _
    %589 = vsyncpa [#allocation3], 1
    %s590 = scalar_lea.sflag [#allocation3], 1
    %591 = vsyncpa %s590, 1
    %592 = vsyncpa [#allocation6], 1
    %s593 = scalar_lea.sflag [#allocation6], 1
    %594 = vsyncpa %s593, 1
    %595 = vsyncpa [#allocation4], 1
    %s596 = scalar_lea.sflag [#allocation4], 1
    %597 = vsyncpa %s596, 1

</llo_original>
